<compile_context>
chip_gen: v5e
topology: v5e:2x2
jax: 0.10.0
libtpu: 0.0.40
codegen_flags: <defaults>
</compile_context>

<pallas_src>
import math
import functools

import jax
import jax.numpy as jnp
from jax.experimental import pallas as pl
from jax.experimental.pallas import tpu as pltpu

OMEGA = 10.0
EPSILON = 2.0
_INV_EPS = 1.0 / EPSILON
_C = OMEGA - OMEGA * math.log(1.0 + OMEGA / EPSILON)

_LANES = 128
_SUBLANES = 8
_MAX_BLOCK_ROWS = 1024   # 1024 x 128 x 4B = 512 KiB per input block; 2 inputs x
                         # 2 pipeline buffers = 2 MiB, fits default scoped VMEM
                         # on v5e/v6e/v7x with room for elementwise temporaries.
_NUM_SPLITS = 2          # leading "parallel" grid axis -> both TCs on v7x;
                         # runs sequentially (negligible overhead) on v5e/v6e.


def _wing_sum_kernel(pred_ref, target_ref, out_ref, acc_ref, *,
                     block_rows, blocks_per_split, n_valid, needs_mask):
    c = pl.program_id(0)            # split (core) index
    k = pl.program_id(1)            # block index within this split
    k_last = pl.num_programs(1) - 1

    @pl.when(k == 0)
    def _():
        acc_ref[...] = jnp.zeros_like(acc_ref)

    # Cast in-kernel: sub-32-bit inputs are DMA'd at native width.
    p = pred_ref[...].astype(jnp.float32)
    t = target_ref[...].astype(jnp.float32)
    d = jnp.abs(t - p)
    loss = jnp.where(d < OMEGA,
                     OMEGA * jnp.log1p(d * _INV_EPS),
                     d - _C)

    if needs_mask:
        # Masks out (a) zero-padded tail elements, (b) OOB rows of a partial
        # last block, (c) duplicated (index-clamped) blocks of an uneven split.
        logical_blk = c * blocks_per_split + k
        row = jax.lax.broadcasted_iota(jnp.int32, loss.shape, 0)
        lane = jax.lax.broadcasted_iota(jnp.int32, loss.shape, 1)
        gidx = (logical_blk * block_rows + row) * _LANES + lane
        loss = jnp.where(gidx < n_valid, loss, 0.0)

    # (R,128) -> (R/8, 8, 128), sum over the leading (vreg) axis: pure VPU
    # elementwise vreg adds, no XLU work inside the loop.
    acc_ref[...] += jnp.sum(loss.reshape(-1, _SUBLANES, _LANES), axis=0)

    @pl.when(k == k_last)
    def _():
        out_ref[...] = acc_ref[...]


@jax.jit
def wing_loss(pred, target):
    assert pred.shape == target.shape
    n = pred.size
    if n == 0:
        # Matches torch's 0/0 behaviour without a kernel launch.
        return jnp.float32(float("nan"))

    p = pred.reshape(-1)
    t = target.reshape(-1)

    # Minimal padding: only up to a whole (8, 128) row block, only when needed.
    # Padded positions have pred == target == 0 => zero loss, and are masked
    # in-kernel anyway.
    tile = _SUBLANES * _LANES
    n_pad_total = pl.cdiv(n, tile) * tile
    pad = n_pad_total - n
    if pad:
        p = jnp.pad(p, (0, pad))
        t = jnp.pad(t, (0, pad))

    rows = n_pad_total // _LANES                 # multiple of 8
    block_rows = min(_MAX_BLOCK_ROWS, rows)      # multiple of 8
    total_blocks = pl.cdiv(rows, block_rows)
    bpc = pl.cdiv(total_blocks, _NUM_SPLITS)
    covered = _NUM_SPLITS * bpc * block_rows * _LANES
    needs_mask = covered != n

    p2 = p.reshape(rows, _LANES)
    t2 = t.reshape(rows, _LANES)

    def in_map(c, k):
        # Clamp so an uneven split never DMAs out of bounds; the duplicated
        # block's contribution is masked to zero inside the kernel.
        return (jnp.minimum(c * bpc + k, total_blocks - 1), 0)

    kernel = functools.partial(
        _wing_sum_kernel,
        block_rows=block_rows,
        blocks_per_split=bpc,
        n_valid=n,
        needs_mask=needs_mask,
    )

    partial_sums = pl.pallas_call(
        kernel,
        out_shape=jax.ShapeDtypeStruct((_NUM_SPLITS * _SUBLANES, _LANES),
                                       jnp.float32),
        grid_spec=pltpu.PrefetchScalarGridSpec(
            num_scalar_prefetch=0,
            grid=(_NUM_SPLITS, bpc),
            in_specs=[
                pl.BlockSpec((block_rows, _LANES), in_map),
                pl.BlockSpec((block_rows, _LANES), in_map),
            ],
            out_specs=pl.BlockSpec((_SUBLANES, _LANES), lambda c, k: (c, 0)),
            scratch_shapes=[pltpu.VMEM((_SUBLANES, _LANES), jnp.float32)],
        ),
        compiler_params=pltpu.CompilerParams(
            dimension_semantics=("parallel", "arbitrary"),
        ),
        cost_estimate=pl.CostEstimate(
            flops=6 * n,
            transcendentals=n,
            bytes_accessed=n * (pred.dtype.itemsize + target.dtype.itemsize)
            + _NUM_SPLITS * _SUBLANES * _LANES * 4,
        ),
    )(p2, t2)

    # Tiny lane-dense slab -> scalar; final reduce + divide stay in JAX.
    return jnp.sum(partial_sums) / jnp.float32(n)


def _wing_loss_ref(pred, target):
    d = jnp.abs(target.astype(jnp.float32) - pred.astype(jnp.float32))
    loss = jnp.where(d < OMEGA, OMEGA * jnp.log1p(d / EPSILON), d - _C)
    return jnp.sum(loss) / d.size


if __name__ == "__main__":
    key = jax.random.PRNGKey(0)
    k1, k2 = jax.random.split(key)

    # Small shape consistent with a dense-prediction regression head (NCHW).
    pred = jax.random.normal(k1, (2, 4, 16, 16), jnp.float32) * 8.0
    target = jax.random.normal(k2, (2, 4, 16, 16), jnp.float32) * 8.0

    out = wing_loss(pred, target)
    jax.block_until_ready(out)
    ref = _wing_loss_ref(pred, target)
    assert jnp.allclose(out, ref, rtol=1e-5, atol=1e-5), (out, ref)

    # Non-aligned size exercises the padding + in-kernel tail-mask path.
    k3, k4 = jax.random.split(k2)
    pred2 = jax.random.normal(k3, (3, 5, 7, 11), jnp.float32) * 8.0
    target2 = jax.random.normal(k4, (3, 5, 7, 11), jnp.float32) * 8.0
    out2 = wing_loss(pred2, target2)
    jax.block_until_ready(out2)
    ref2 = _wing_loss_ref(pred2, target2)
    assert jnp.allclose(out2, ref2, rtol=1e-5, atol=1e-5), (out2, ref2)

    print("KERNEL_OK")
</pallas_src>

<mosaic_0001>
module attributes {stable_mosaic.version = 11 : i64} {
  func.func @_wing_sum_kernel(%arg0: i32, %arg1: i32, %arg2: memref<16x128xf32, #tpu.memory_space<vmem>>, %arg3: memref<16x128xf32, #tpu.memory_space<vmem>>, %arg4: memref<8x128xf32, #tpu.memory_space<vmem>>, %arg5: memref<8x128xf32, #tpu.memory_space<vmem>>) attributes {dimension_semantics = [#tpu.dimension_semantics<parallel>, #tpu.dimension_semantics<arbitrary>], iteration_bounds = array<i64: 2, 1>, scalar_prefetch = 0 : i64, scratch_operands = 1 : i64, tpu.core_type = #tpu.core_type<tc>, window_params = [{transform_indices = @transform_0, window_bounds = array<i64: 16, 128>}, {transform_indices = @transform_1, window_bounds = array<i64: 16, 128>}, {transform_indices = @transform_2, window_bounds = array<i64: 8, 128>}]} {
    %c0_i32 = arith.constant 0 : i32
    %0 = arith.cmpi eq, %arg1, %c0_i32 : i32
    %1 = arith.extui %0 : i1 to i32
    %c0_i32_0 = arith.constant 0 : i32
    %2 = arith.cmpi ne, %1, %c0_i32_0 : i32
    scf.if %2 {
      %cst_15 = arith.constant 0.000000e+00 : f32
      %39 = vector.broadcast %cst_15 : f32 to vector<8x128xf32>
      %c0_16 = arith.constant 0 : index
      %c0_17 = arith.constant 0 : index
      %40 = vector.load %arg5[%c0_16, %c0_17] : memref<8x128xf32, #tpu.memory_space<vmem>>, vector<8x128xf32>
      tpu.vector_store %arg5[%c0_16, %c0_17], %39 {strides = array<i32>} : memref<8x128xf32, #tpu.memory_space<vmem>>, vector<8x128xf32>,
    } else {
    }
    %c0 = arith.constant 0 : index
    %c0_1 = arith.constant 0 : index
    %3 = vector.load %arg2[%c0, %c0_1] : memref<16x128xf32, #tpu.memory_space<vmem>>, vector<16x128xf32>
    %c0_2 = arith.constant 0 : index
    %c0_3 = arith.constant 0 : index
    %4 = vector.load %arg3[%c0_2, %c0_3] : memref<16x128xf32, #tpu.memory_space<vmem>>, vector<16x128xf32>
    %5 = arith.subf %4, %3 : vector<16x128xf32>
    %6 = math.absf %5 : vector<16x128xf32>
    %cst = arith.constant 1.000000e+01 : f32
    %7 = vector.broadcast %cst : f32 to vector<16x128xf32>
    %8 = arith.cmpf olt, %6, %7 : vector<16x128xf32>
    %cst_4 = arith.constant 5.000000e-01 : f32
    %9 = vector.broadcast %cst_4 : f32 to vector<16x128xf32>
    %10 = arith.mulf %6, %9 : vector<16x128xf32>
    %11 = math.log1p %10 : vector<16x128xf32>
    %cst_5 = arith.constant 1.000000e+01 : f32
    %12 = vector.broadcast %cst_5 : f32 to vector<16x128xf32>
    %13 = arith.mulf %12, %11 : vector<16x128xf32>
    %cst_6 = arith.constant -7.9175949 : f32
    %14 = vector.broadcast %cst_6 : f32 to vector<16x128xf32>
    %15 = arith.subf %6, %14 : vector<16x128xf32>
    %16 = arith.select %8, %13, %15 : vector<16x128xi1>, vector<16x128xf32>
    %c1_i32 = arith.constant 1 : i32
    %17 = arith.muli %arg0, %c1_i32 : i32
    %18 = arith.addi %17, %arg1 : i32
    %19 = tpu.iota {dimensions = array<i32: 0>} : vector<16x128xi32>
    %20 = tpu.iota {dimensions = array<i32: 1>} : vector<16x128xi32>
    %c16_i32 = arith.constant 16 : i32
    %21 = arith.muli %18, %c16_i32 : i32
    %22 = vector.broadcast %21 : i32 to vector<16x128xi32>
    %23 = arith.addi %22, %19 : vector<16x128xi32>
    %c128_i32 = arith.constant 128 : i32
    %24 = vector.broadcast %c128_i32 : i32 to vector<16x128xi32>
    %25 = arith.muli %23, %24 : vector<16x128xi32>
    %26 = arith.addi %25, %20 : vector<16x128xi32>
    %c2048_i32 = arith.constant 2048 : i32
    %27 = vector.broadcast %c2048_i32 : i32 to vector<16x128xi32>
    %28 = arith.cmpi slt, %26, %27 : vector<16x128xi32>
    %cst_7 = arith.constant 0.000000e+00 : f32
    %29 = vector.broadcast %cst_7 : f32 to vector<16x128xf32>
    %30 = arith.select %28, %16, %29 : vector<16x128xi1>, vector<16x128xf32>
    %c0_8 = arith.constant 0 : index
    %c0_9 = arith.constant 0 : index
    %31 = vector.load %arg5[%c0_8, %c0_9] : memref<8x128xf32, #tpu.memory_space<vmem>>, vector<8x128xf32>
    %32 = vector.shape_cast %30 : vector<16x128xf32> to vector<2x8x128xf32>
    %cst_10 = arith.constant dense<0.000000e+00> : vector<8x128xf32>
    %33 = vector.multi_reduction <add>, %32, %cst_10 [0] : vector<2x8x128xf32> to vector<8x128xf32>
    %34 = arith.addf %31, %33 : vector<8x128xf32>
    %c0_11 = arith.constant 0 : index
    %c0_12 = arith.constant 0 : index
    %35 = vector.load %arg5[%c0_11, %c0_12] : memref<8x128xf32, #tpu.memory_space<vmem>>, vector<8x128xf32>
    tpu.vector_store %arg5[%c0_11, %c0_12], %34 {strides = array<i32>} : memref<8x128xf32, #tpu.memory_space<vmem>>, vector<8x128xf32>,
    %c0_i32_13 = arith.constant 0 : i32
    %36 = arith.cmpi eq, %arg1, %c0_i32_13 : i32
    %37 = arith.extui %36 : i1 to i32
    %c0_i32_14 = arith.constant 0 : i32
    %38 = arith.cmpi ne, %37, %c0_i32_14 : i32
    scf.if %38 {
      %c0_15 = arith.constant 0 : index
      %c0_16 = arith.constant 0 : index
      %39 = vector.load %arg5[%c0_15, %c0_16] : memref<8x128xf32, #tpu.memory_space<vmem>>, vector<8x128xf32>
      %c0_17 = arith.constant 0 : index
      %c0_18 = arith.constant 0 : index
      %40 = vector.load %arg4[%c0_17, %c0_18] : memref<8x128xf32, #tpu.memory_space<vmem>>, vector<8x128xf32>
      tpu.vector_store %arg4[%c0_17, %c0_18], %39 {strides = array<i32>} : memref<8x128xf32, #tpu.memory_space<vmem>>, vector<8x128xf32>,
    } else {
    }
    return
  }
  func.func @transform_0(%arg0: i32, %arg1: i32) -> (i32, i32) {
    %c1_i32 = arith.constant 1 : i32
    %0 = arith.muli %arg0, %c1_i32 : i32
    %1 = arith.addi %0, %arg1 : i32
    %c0_i32 = arith.constant 0 : i32
    %2 = arith.minsi %1, %c0_i32 : i32
    %c0_i32_0 = arith.constant 0 : i32
    %c0_i32_1 = arith.constant 0 : i32
    return %2, %c0_i32_0 : i32, i32
  }
  func.func @transform_1(%arg0: i32, %arg1: i32) -> (i32, i32) {
    %c1_i32 = arith.constant 1 : i32
    %0 = arith.muli %arg0, %c1_i32 : i32
    %1 = arith.addi %0, %arg1 : i32
    %c0_i32 = arith.constant 0 : i32
    %2 = arith.minsi %1, %c0_i32 : i32
    %c0_i32_0 = arith.constant 0 : i32
    %c0_i32_1 = arith.constant 0 : i32
    return %2, %c0_i32_0 : i32, i32
  }
  func.func @transform_2(%arg0: i32, %arg1: i32) -> (i32, i32) {
    %c0_i32 = arith.constant 0 : i32
    %c0_i32_0 = arith.constant 0 : i32
    return %arg0, %c0_i32 : i32, i32
  }
}

</mosaic_0001>

<llo_original>
// kernel: wing_loss.1
$region0: #{wing_loss.1}
  #allocation0 [shape = 'u32[]', space=smem, size = 0x4, offset = 0x4, fixed_abs, tag = 'smem constant byte address 0x4 - core index']
  #allocation1 [shape = 'u32[72,128]{1,0:T(1,128)}', space=vmem, size = 0x9000, scoped, tag = 'internal scratch']
  #allocation2 [shape = 'f32[8,128]{1,0:T(8,128)}', space=vmem, size = 0x1000, scoped, tag = 'scratch operand']
  %s0 = inlined_call_operand.vmem [shape: f32[16,128], index: 0, kind: input, shape index: {}]
  %s1 = inlined_call_operand.vmem [shape: f32[16,128], index: 1, kind: input, shape index: {}]
  %s2 = inlined_call_operand.vmem [shape: f32[16,128], index: 2, kind: output, shape index: {}]
  %s3 = sld [smem:[#allocation0]]
  $region49: #{wing_loss.1} parent=0
    _
  %s5 = ssub.s32 1, %s3
  %s6 = scalar_select 0, %s5, %s3
  loop: start=0, step=1, limit=4
  $region2: #{wing_loss.1} parent=0 // loop_pre_header
    _
  $region3: #{wing_loss.1} parent=0 // loop_header
    %s8 = sphi 0, %s12
    %p9 = scmp.ge.s32.totalorder %s8, 4
    %s15 = sphi 0, %s27
    %s16 = sphi 0, %s23
    %s17 = sphi 0, %s15
    %s18 = sphi 0, %s16
    %s19 = sphi 0, %s17
    %s20 = sphi 0, %s18
    %s36 = sphi 0, %s38
    %s39 = sphi 0, %s36
    %s40 = sphi 0, %s39
    %s56 = sphi 0, %s40
    %s68 = sphi 0, %s70
    %s71 = sphi 0, %s68
    %s72 = sphi 0, %s71
    %s88 = sphi 0, %s72
    %s94 = sphi 0, %s96
    %s97 = sphi 0, %s94
    %s98 = sphi 0, %s97
    %s114 = sphi 0, %s98
  $region4: #{wing_loss.1} parent=0 // loop_header_branch
    %11 = sbr.rel (%p9) target = $region8
  $region5: #{wing_loss.1} parent=0 // loop_body
    %s13 = ssub.s32 %s8, 1
    %s14 = ssub.s32 %s8, 2
    %s21 = sadd.s32 1, %s16
    %p22 = scmp.ge.s32.totalorder %s21, 1
    %s23 = scalar_select %p22, 0, %s21
    %s24 = sadd.s32 1, %s15
    %s25 = scalar_select %p22, %s24, %s15
    %p26 = scmp.ge.s32.totalorder %s25, 2
    %s27 = scalar_select %p26, 0, %s25
    %s28 = sadd.s32 %s15, %s16
    %p29 = scmp.lt.s32.totalorder %s28, 0
    %s30 = scalar_select %p29, %s28, 0
    %s31 = sadd.s32 %s27, %s23
    %p32 = scmp.lt.s32.totalorder %s31, 0
    %s33 = scalar_select %p32, %s31, 0
    %s34 = ssub.s32 %s30, %s33
    %p35 = scmp.eq.s32.totalorder %s34, 0
    %s37 = sadd.s32 %s36, 1
    %s38 = scalar_select %p35, %s36, %s37
    %p41 = pneg %p35
    %p42 = scmp.eq.s32.totalorder %s8, 1
    %p43 = por %p41, %p42
    %p44 = scmp.ne.s32.totalorder %s36, %s39
    %p45 = scmp.eq.s32.totalorder %s8, 0
    %p46 = por %p44, %p45
    %p47 = scmp.ne.s32.totalorder %s36, %s39
    %p48 = scmp.eq.s32.totalorder %s13, 1
    %p49 = por %p47, %p48
    %p50 = scmp.ne.s32.totalorder %s39, %s40
    %p51 = scmp.eq.s32.totalorder %s13, 0
    %p52 = por %p50, %p51
    %p53 = scmp.ne.s32.totalorder %s39, %s40
    %p54 = scmp.eq.s32.totalorder %s14, 1
    %p55 = por %p53, %p54
    %p57 = scmp.ne.s32.totalorder %s40, %s56
    %p58 = scmp.eq.s32.totalorder %s14, 0
    %p59 = por %p57, %p58
    %s60 = sadd.s32 %s15, %s16
    %p61 = scmp.lt.s32.totalorder %s60, 0
    %s62 = scalar_select %p61, %s60, 0
    %s63 = sadd.s32 %s27, %s23
    %p64 = scmp.lt.s32.totalorder %s63, 0
    %s65 = scalar_select %p64, %s63, 0
    %s66 = ssub.s32 %s62, %s65
    %p67 = scmp.eq.s32.totalorder %s66, 0
    %s69 = sadd.s32 %s68, 1
    %s70 = scalar_select %p67, %s68, %s69
    %p73 = pneg %p67
    %p74 = scmp.eq.s32.totalorder %s8, 1
    %p75 = por %p73, %p74
    %p76 = scmp.ne.s32.totalorder %s68, %s71
    %p77 = scmp.eq.s32.totalorder %s8, 0
    %p78 = por %p76, %p77
    %p79 = scmp.ne.s32.totalorder %s68, %s71
    %p80 = scmp.eq.s32.totalorder %s13, 1
    %p81 = por %p79, %p80
    %p82 = scmp.ne.s32.totalorder %s71, %s72
    %p83 = scmp.eq.s32.totalorder %s13, 0
    %p84 = por %p82, %p83
    %p85 = scmp.ne.s32.totalorder %s71, %s72
    %p86 = scmp.eq.s32.totalorder %s14, 1
    %p87 = por %p85, %p86
    %p89 = scmp.ne.s32.totalorder %s72, %s88
    %p90 = scmp.eq.s32.totalorder %s14, 0
    %p91 = por %p89, %p90
    %s92 = ssub.s32 %s15, %s27
    %p93 = scmp.eq.s32.totalorder %s92, 0
    %s95 = sadd.s32 %s94, 1
    %s96 = scalar_select %p93, %s94, %s95
    %p99 = pneg %p93
    %p100 = scmp.eq.s32.totalorder %s8, 1
    %p101 = por %p99, %p100
    %p102 = scmp.ne.s32.totalorder %s94, %s97
    %p103 = scmp.eq.s32.totalorder %s8, 0
    %p104 = por %p102, %p103
    %p105 = scmp.ne.s32.totalorder %s94, %s97
    %p106 = scmp.eq.s32.totalorder %s13, 1
    %p107 = por %p105, %p106
    %p108 = scmp.ne.s32.totalorder %s97, %s98
    %p109 = scmp.eq.s32.totalorder %s13, 0
    %p110 = por %p108, %p109
    %p111 = scmp.ne.s32.totalorder %s97, %s98
    %p112 = scmp.eq.s32.totalorder %s14, 1
    %p113 = por %p111, %p112
    %p115 = scmp.ne.s32.totalorder %s98, %s114
    %p116 = scmp.eq.s32.totalorder %s14, 0
    %p117 = por %p115, %p116
    %p118 = scmp.le.s32.totalorder 1, %s8
    %p119 = scmp.lt.s32.totalorder %s8, 3
    %p120 = pnand %p118, %p119
    %p121 = pneg %p120
    // Predicated region
    $region9: #{wing_loss.1} parent=5 // pred_check
      _
    $region10: #{wing_loss.1} parent=5 // pred_check_branch
      %123 = sbr.rel (%p120) target = $region12
    $region11: #{wing_loss.1} parent=5 // pred_region
      %s124 = ssub.s32 %s8, 1
    $region12: #{wing_loss.1} parent=5 // pred_fallthru
      _
    %p125 = scmp.lt.s32.totalorder %s8, 2
    // Predicated region
    $region13: #{wing_loss.1} parent=5 // pred_check
      %p126 = pneg %p125
    $region14: #{wing_loss.1} parent=5 // pred_check_branch
      %128 = sbr.rel (%p126) target = $region16
    $region15: #{wing_loss.1} parent=5 // pred_region
      // Predicated region
      $region17: #{wing_loss.1} parent=15 // pred_check
        %p129 = pneg %p46
      $region18: #{wing_loss.1} parent=15 // pred_check_branch
        %131 = sbr.rel (%p129) target = $region20
      $region19: #{wing_loss.1} parent=15 // pred_region
        %s132 = sadd.s32 %s15, %s16
        %p133 = scmp.lt.s32.totalorder %s132, 0
        %s134 = scalar_select %p133, %s132, 0
        %s135 = smul.u32 2, %s134
        %p136 = scmp.lt.s32.totalorder %s135, 1
        %s137 = scalar_select %p136, %s135, 1
        %s138 = smul.addr %s137, 8
        %s139 = scalar_lea.vmem %s0, %s138
        %s140 = sadd.s32 %s15, %s16
        %p141 = scmp.lt.s32.totalorder %s140, 0
        %s142 = scalar_select %p141, %s140, 0
        %s143 = smul.u32 2, %s142
      $region20: #{wing_loss.1} parent=15 // pred_fallthru
        _
      // Predicated region
      $region21: #{wing_loss.1} parent=15 // pred_check
        %p144 = pneg %p78
      $region22: #{wing_loss.1} parent=15 // pred_check_branch
        %146 = sbr.rel (%p144) target = $region24
      $region23: #{wing_loss.1} parent=15 // pred_region
        %s147 = sadd.s32 %s15, %s16
        %p148 = scmp.lt.s32.totalorder %s147, 0
        %s149 = scalar_select %p148, %s147, 0
        %s150 = smul.u32 2, %s149
        %p151 = scmp.lt.s32.totalorder %s150, 1
        %s152 = scalar_select %p151, %s150, 1
        %s153 = smul.addr %s152, 8
        %s154 = scalar_lea.vmem %s1, %s153
        %s155 = sadd.s32 %s15, %s16
        %p156 = scmp.lt.s32.totalorder %s155, 0
        %s157 = scalar_select %p156, %s155, 0
        %s158 = smul.u32 2, %s157
      $region24: #{wing_loss.1} parent=15 // pred_fallthru
        _
    $region16: #{wing_loss.1} parent=5 // pred_fallthru
      _
    %p159 = scmp.le.s32.totalorder 1, %s8
    %p160 = scmp.lt.s32.totalorder %s8, 3
    %p161 = pnand %p159, %p160
    %p162 = pneg %p161
    // Predicated region
    $region25: #{wing_loss.1} parent=5 // pred_check
      _
    $region26: #{wing_loss.1} parent=5 // pred_check_branch
      %164 = sbr.rel (%p161) target = $region28
    $region27: #{wing_loss.1} parent=5 // pred_region
      %s165 = ssub.s32 %s8, 1
      %s166 = sadd.s32 %s17, %s18
      %p167 = scmp.lt.s32.totalorder %s166, 0
      %s168 = scalar_select %p167, %s166, 0
      %s169 = smul.u32 2, %s168
      %p170 = scmp.lt.s32.totalorder %s169, 1
      %s171 = scalar_select %p170, %s169, 1
      %s172 = smul.addr %s171, 8
      %s173 = scalar_lea.vmem %s0, %s172
      %p174 = pneg %p52
      %p175 = pneg %p49
      %s176 = sadd.s32 %s17, %s18
      %p177 = scmp.lt.s32.totalorder %s176, 0
      %s178 = scalar_select %p177, %s176, 0
      %s179 = smul.u32 2, %s178
      %p180 = scmp.lt.s32.totalorder %s179, 1
      %s181 = scalar_select %p180, %s179, 1
      %s182 = smul.addr %s181, 8
      %s183 = scalar_lea.vmem %s1, %s182
      %p184 = pneg %p84
      %p185 = pneg %p81
      %p186 = pneg %p110
      %p187 = pneg %p107
      %p188 = scmp.lt.s32.totalorder %s17, 1
      %s189 = scalar_select %p188, %s17, 1
      %s190 = smul.addr %s189, 8
      %s191 = scalar_lea.vmem %s2, %s190
      %s192 = sadd.s32 %s17, %s18
      %p193 = scmp.lt.s32.totalorder %s192, 0
      %s194 = scalar_select %p193, %s192, 0
      %s195 = smul.u32 2, %s194
      %p196 = scmp.lt.s32.totalorder %s195, 1
      %s197 = scalar_select %p196, %s195, 1
      %s198 = smul.addr %s197, 8
      %s199 = scalar_lea.vmem %s0, %s198
      %s200 = sadd.s32 %s17, %s18
      %p201 = scmp.lt.s32.totalorder %s200, 0
      %s202 = scalar_select %p201, %s200, 0
      %s203 = smul.u32 2, %s202
      %s204 = sadd.s32 %s17, %s18
      %p205 = scmp.lt.s32.totalorder %s204, 0
      %s206 = scalar_select %p205, %s204, 0
      %s207 = smul.u32 2, %s206
      %p208 = scmp.lt.s32.totalorder %s207, 1
      %s209 = scalar_select %p208, %s207, 1
      %s210 = smul.addr %s209, 8
      %s211 = scalar_lea.vmem %s1, %s210
      %s212 = sadd.s32 %s17, %s18
      %p213 = scmp.lt.s32.totalorder %s212, 0
      %s214 = scalar_select %p213, %s212, 0
      %s215 = smul.u32 2, %s214
      %p216 = scmp.lt.s32.totalorder %s17, 1
      %s217 = scalar_select %p216, %s17, 1
      %s218 = smul.addr %s217, 8
      %s219 = scalar_lea.vmem %s2, %s218
      %p220 = scmp.eq.s32.totalorder %s18, 0
      // Predicated region
      $region29: #{wing_loss.1} parent=27 // pred_check
        %p221 = pneg %p220
      $region30: #{wing_loss.1} parent=27 // pred_check_branch
        %223 = sbr.rel (%p221) target = $region32
      $region31: #{wing_loss.1} parent=27 // pred_region
        %224 = vst [vmem:[#allocation2] sm:$0xff] 0.0
      $region32: #{wing_loss.1} parent=27 // pred_fallthru
        _
      %v225 = vld [vmem:[%s199] sm:$0xff]
      %v226 = vld [vmem:[%s199 + $0x8] sm:$0xff]
      %v227 = vld [vmem:[%s211] sm:$0xff]
      %v228 = vld [vmem:[%s211 + $0x8] sm:$0xff]
      %v229 = vsub.f32 %v227, %v225
      %v230 = vsub.f32 %v228, %v226
      %v231 = vand.u32 2147483647, %v229
      %v232 = vand.u32 2147483647, %v230
      %vm233 = vcmp.lt.f32.partialorder %v231, 10.0
      %vm234 = vcmp.lt.f32.partialorder %v232, 10.0
      %v235 = vmul.f32 %v231, 0.5
      %v236 = vmul.f32 %v232, 0.5
      %v237 = vadd.f32 %v235, 1.0
      %v238 = vlog2.pop %v237
      %v239 = vmul.f32 %v238, 0.6931472
      %v240 = vmul.f32 -0.5, %v235
      %v241 = vadd.f32 %v240, 1.0
      %v242 = vmul.f32 %v241, %v235
      %v243 = vand.u32 2147483647, %v235
      %vm244 = vcmp.lt.f32.partialorder %v243, 0.0004427343
      %v245 = vsel %vm244, %v242, %v239
      %v246 = vadd.f32 %v236, 1.0
      %v247 = vlog2.pop %v246
      %v248 = vmul.f32 %v247, 0.6931472
      %v249 = vmul.f32 -0.5, %v236
      %v250 = vadd.f32 %v249, 1.0
      %v251 = vmul.f32 %v250, %v236
      %v252 = vand.u32 2147483647, %v236
      %vm253 = vcmp.lt.f32.partialorder %v252, 0.0004427343
      %v254 = vsel %vm253, %v251, %v248
      %v255 = vmul.f32 %v245, 10.0
      %v256 = vmul.f32 %v254, 10.0
      %v257 = vsub.f32 %v231, -7.917595
      %v258 = vsub.f32 %v232, -7.917595
      %v259 = vsel %vm233, %v255, %v257
      %v260 = vsel %vm234, %v256, %v258
      %s261 = sadd.s32 %s17, %s18
      %v262 = vlaneseq
      %v263 = vshrl.u32 %v262, 7
      %v264 = vadd.s32 %v263, 8
      %v265 = vlaneseq
      %v266 = vand.u32 %v265, 127
      %s267 = smul.u32 %s261, 16
      %v268 = vstv %s267
      %v269 = vadd.s32 %v268, %v263
      %v270 = vadd.s32 %v268, %v264
      %v271 = vmul.u32 %v269, 128
      %v272 = vmul.u32 %v270, 128
      %v273 = vadd.s32 %v271, %v266
      %v274 = vadd.s32 %v272, %v266
      %vm275 = vcmp.lt.s32.totalorder %v273, 2048
      %vm276 = vcmp.lt.s32.totalorder %v274, 2048
      %v277 = vsel %vm275, %v259, 0.0
      %v278 = vsel %vm276, %v260, 0.0
      %v279 = vld [vmem:[#allocation2] sm:$0xff]
      %v280 = vadd.f32 %v277, %v278
      %v281 = vadd.f32 %v279, %v280
      %282 = vst [vmem:[#allocation2] sm:$0xff] %v281
      // Predicated region
      $region33: #{wing_loss.1} parent=27 // pred_check
        %p283 = pneg %p220
      $region34: #{wing_loss.1} parent=27 // pred_check_branch
        %285 = sbr.rel (%p283) target = $region36
      $region35: #{wing_loss.1} parent=27 // pred_region
        %v286 = vld [vmem:[#allocation2] sm:$0xff]
        %287 = vst [vmem:[%s219] sm:$0xff] %v286
      $region36: #{wing_loss.1} parent=27 // pred_fallthru
        _
      %p288 = scmp.lt.s32.totalorder %s17, 1
      %s289 = scalar_select %p288, %s17, 1
      %s290 = smul.addr %s289, 8
      %s291 = scalar_lea.vmem %s2, %s290
      // Predicated region
      $region37: #{wing_loss.1} parent=27 // pred_check
        %p292 = pneg %p107
      $region38: #{wing_loss.1} parent=27 // pred_check_branch
        %294 = sbr.rel (%p292) target = $region40
      $region39: #{wing_loss.1} parent=27 // pred_region
        _
      $region40: #{wing_loss.1} parent=27 // pred_fallthru
        _
    $region28: #{wing_loss.1} parent=5 // pred_fallthru
      _
    %p295 = scmp.le.s32.totalorder 2, %s8
    // Predicated region
    $region41: #{wing_loss.1} parent=5 // pred_check
      %p296 = pneg %p295
    $region42: #{wing_loss.1} parent=5 // pred_check_branch
      %298 = sbr.rel (%p296) target = $region44
    $region43: #{wing_loss.1} parent=5 // pred_region
      %s299 = ssub.s32 %s8, 2
      // Predicated region
      $region45: #{wing_loss.1} parent=43 // pred_check
        %p300 = pneg %p113
      $region46: #{wing_loss.1} parent=43 // pred_check_branch
        %302 = sbr.rel (%p300) target = $region48
      $region47: #{wing_loss.1} parent=43 // pred_region
        %p303 = scmp.lt.s32.totalorder %s19, 1
        %s304 = scalar_select %p303, %s19, 1
        %s305 = smul.addr %s304, 8
        %s306 = scalar_lea.vmem %s2, %s305
      $region48: #{wing_loss.1} parent=43 // pred_fallthru
        _
    $region44: #{wing_loss.1} parent=5 // pred_fallthru
      _
  $region6: #{wing_loss.1} parent=0 // loop_footer
    %s12 = sadd.s32 1, %s8
  $region7: #{wing_loss.1} parent=0 // loop_footer_branch
    %7 = sbr.rel target = $region3
  $region8: #{wing_loss.1} parent=0 // loop_exit
    _

</llo_original>
